<compile_context>
chip_gen: v7x
topology: tpu7x:2x2x1
jax: 0.10.0
libtpu: 0.0.40
codegen_flags: <defaults>
</compile_context>

<pallas_src>
import jax
import jax.numpy as jnp
from jax.experimental import pallas as pl
from jax.experimental.pallas import tpu as pltpu


# Tap offsets (dy, dx) for the two dilations and their union.  Host-side
# weight packing and in-kernel patch construction iterate these in the same
# order, so they stay consistent by construction.
_D1_OFFS = tuple((dy, dx) for dy in (-1, 0, 1) for dx in (-1, 0, 1))   # dilation 1
_D2_OFFS = tuple((dy, dx) for dy in (-2, 0, 2) for dx in (-2, 0, 2))   # dilation 2
_UNION_OFFS = tuple(sorted(set(_D1_OFFS) | set(_D2_OFFS)))             # 17 offsets
_D1_SET = frozenset(_D1_OFFS)
_D2_SET = frozenset(_D2_OFFS)


# ---------------------------------------------------------------------------
# pltpu.roll convention probe
# ---------------------------------------------------------------------------
# The static shift amounts baked into the conv kernel depend on pltpu.roll's
# direction convention; verify it once on the device instead of risking a
# silently mirrored convolution.
_ROLL_IS_NP_CONVENTION = None


def _resolve_roll_convention():
    global _ROLL_IS_NP_CONVENTION
    if _ROLL_IS_NP_CONVENTION is not None:
        return
    n = 128

    def probe(x_ref, o_ref):
        o_ref[...] = pltpu.roll(x_ref[...], 1, axis=1)

    x = jax.lax.broadcasted_iota(jnp.float32, (8, n), 1)
    out = pl.pallas_call(
        probe, out_shape=jax.ShapeDtypeStruct((8, n), jnp.float32))(x)
    first = float(jax.device_get(out)[0, 0])
    if first == float(n - 1):
        _ROLL_IS_NP_CONVENTION = True       # out[i] = in[(i - shift) % n]
    elif first == 1.0:
        _ROLL_IS_NP_CONVENTION = False      # out[i] = in[(i + shift) % n]
    else:
        raise RuntimeError(f"unexpected pltpu.roll behaviour (out[0]={first})")


def _roll_amount(s, n):
    """Static amount k so that pltpu.roll(v, k, axis)[..., p] == v[..., (p+s) % n]."""
    assert _ROLL_IS_NP_CONVENTION is not None, "roll convention not resolved"
    return (-s) % n if _ROLL_IS_NP_CONVENTION else s % n


# ---------------------------------------------------------------------------
# Fused MsFeat kernel
# ---------------------------------------------------------------------------
def _build_kernel(H, W, nb):
    HW = H * W

    def kernel(coords_ref, x_ref, w12_ref, w34_ref, b_ref, o_ref):
        # coords stays a (tiny) input rather than in-kernel div/mod on the lane
        # axis, for lowering robustness with non-power-of-two W.
        ypos = coords_ref[0:1, :]                       # (1, HW) int32
        xpos = coords_ref[1:2, :]

        # Border-validity masks: computed ONCE per grid step, shared by both
        # conv stages (D1/D2 are subsets of the union) and all nb images.
        masks = {
            (dy, dx): ((ypos + dy >= 0) & (ypos + dy < H) &
                       (xpos + dx >= 0) & (xpos + dx < W))
            for (dy, dx) in _UNION_OFFS
        }

        def shifted(v, dy, dx):
            # v: (C, HW) bf16 flattened image.  Returns u with
            #   u[:, y*W + x] = v[:, (y+dy)*W + (x+dx)]  if (y+dy, x+dx) inside
            #                 = 0                        otherwise ('same' pad)
            # Roll + select stay in bf16 (select is a bitwise op, fine on v5e).
            s = dy * W + dx
            k = _roll_amount(s, HW)
            u = pltpu.roll(v, k, axis=1) if k else v
            return jnp.where(masks[(dy, dx)], u, jnp.zeros((), v.dtype))

        w12 = w12_ref[...]                              # (32, 17*cin_pad) bf16
        w34 = w34_ref[...]                              # (32, 288)        bf16
        b12 = b_ref[0:32]                               # (32, 1) f32
        b34 = b_ref[32:64]
        od = o_ref.dtype

        # Statically unrolled over the nb images of this block (amortizes the
        # per-grid-step overhead; weights/masks are shared).
        for m in range(nb):
            x = x_ref[m]                                # (cin_pad, HW) bf16

            # ---- stage 1: conv1 (dil=1) + conv2 (dil=2) share x -> one
            # matmul over the 17-tap union, bf16 patches, f32 accumulation.
            patches12 = jnp.concatenate(
                [shifted(x, dy, dx) for (dy, dx) in _UNION_OFFS], axis=0)
            y12 = jnp.dot(w12, patches12,
                          preferred_element_type=jnp.float32)     # (32, HW)
            y12 = jnp.maximum(y12 + b12, 0.0)                     # rows: c1|c2

            # Cast c1/c2 to bf16 ONCE, then build stage-2 patches in bf16.
            c1 = y12[0:16].astype(jnp.bfloat16)
            c2 = y12[16:32].astype(jnp.bfloat16)

            # ---- stage 2: conv3(c2, dil=1) and conv4(c1, dil=2) merged into
            # ONE matmul with a block-diagonal packed weight.
            patches34 = jnp.concatenate(
                [shifted(c2, dy, dx) for (dy, dx) in _D1_OFFS] +
                [shifted(c1, dy, dx) for (dy, dx) in _D2_OFFS], axis=0)
            y34 = jnp.dot(w34, patches34,
                          preferred_element_type=jnp.float32)     # (32, HW)
            y34 = jnp.maximum(y34 + b34, 0.0)                     # rows: c3|c4

            # ---- fused channel concat, NCHW, lane-dense stores:
            # rows 0-15 = c1, 16-31 = c2, 32-47 = c3, 48-63 = c4
            o_ref[m, 0:32, :] = y12.astype(od)
            o_ref[m, 32:64, :] = y34.astype(od)

    return kernel


# ---------------------------------------------------------------------------
# Host-side weight packing (done ONCE per params object, cached)
# ---------------------------------------------------------------------------
def _round_up(x, m):
    return (x + m - 1) // m * m


def _pack_stage1_weights(w1, w2, cin, cin_pad):
    """HWIO (3,3,cin,16) x2 -> (32, 17*cin_pad) bf16 over the union tap set.
    Rows 0-15 = conv1 (dilation 1), rows 16-31 = conv2 (dilation 2)."""
    zero16 = jnp.zeros((16, cin_pad), jnp.float32)

    def tap(w, ky, kx):
        t = jnp.transpose(w[ky, kx]).astype(jnp.float32)          # (16, cin)
        return jnp.pad(t, ((0, 0), (0, cin_pad - cin)))

    blocks = []
    for dy, dx in _UNION_OFFS:
        top = tap(w1, dy + 1, dx + 1) if (dy, dx) in _D1_SET else zero16
        bot = tap(w2, dy // 2 + 1, dx // 2 + 1) if (dy, dx) in _D2_SET else zero16
        blocks.append(jnp.concatenate([top, bot], axis=0))        # (32, cin_pad)
    return jnp.concatenate(blocks, axis=1).astype(jnp.bfloat16)


def _pack_stage2_weights(w3, w4):
    """conv3 (on c2, dil=1) and conv4 (on c1, dil=2) merged block-diagonally
    into a single (32, 288) bf16 weight (rows 0-15 = conv3, 16-31 = conv4)."""
    p3 = jnp.concatenate(
        [jnp.transpose(w3[dy + 1, dx + 1]).astype(jnp.float32)
         for (dy, dx) in _D1_OFFS], axis=1)                        # (16, 144)
    p4 = jnp.concatenate(
        [jnp.transpose(w4[dy // 2 + 1, dx // 2 + 1]).astype(jnp.float32)
         for (dy, dx) in _D2_OFFS], axis=1)                        # (16, 144)
    z = jnp.zeros_like(p3)
    return jnp.concatenate(
        [jnp.concatenate([p3, z], axis=1),
         jnp.concatenate([z, p4], axis=1)], axis=0).astype(jnp.bfloat16)


def pack_msfeat_params(params):
    """Pack weights + bias once into MXU-ready operands."""
    cin = params["w1"].shape[2]
    cin_pad = _round_up(cin, 16)        # bf16 sublane tile = 16 rows
    w12 = _pack_stage1_weights(params["w1"], params["w2"], cin, cin_pad)
    w34 = _pack_stage2_weights(params["w3"], params["w4"])
    bias = jnp.concatenate([params["b1"], params["b2"],
                            params["b3"], params["b4"]])
    bias = bias.astype(jnp.float32).reshape(64, 1)
    return {"w12": w12, "w34": w34, "bias": bias}


_pack_params_jit = jax.jit(pack_msfeat_params)


# ---------------------------------------------------------------------------
# Forward
# ---------------------------------------------------------------------------
def _choose_group(N, HW):
    """Images per grid step: widen blocks to amortize per-step overhead but
    keep >= 2 parallel grid steps (v7x has two TensorCores)."""
    nb = max(1, min(N, max(1, 1024 // max(HW, 1)), 8))
    while nb > 1 and (N // nb) < 2:
        nb -= 1
    while N % nb != 0:
        nb -= 1
    return nb


def _msfeat_impl(x_nchw, w12, w34, bias, *, nb, out_dtype=jnp.float32):
    N, cin, H, W = x_nchw.shape
    HW = H * W
    cin_pad = w12.shape[1] // len(_UNION_OFFS)
    assert cin_pad % 16 == 0 and cin_pad >= cin
    assert N % nb == 0

    # Activations: NCHW -> (N, cin_pad, H*W), bf16.  Only the channel dim is
    # padded (to the bf16 sublane tile of 16); no spatial halo pads.
    x = x_nchw.reshape(N, cin, HW)
    if cin_pad != cin:
        x = jnp.pad(x, ((0, 0), (0, cin_pad - cin), (0, 0)))
    x = x.astype(jnp.bfloat16)

    # Per-pixel (y, x) coordinates of the flattened spatial axis (tap masks).
    ii = jnp.arange(HW, dtype=jnp.int32)
    coords = jnp.stack([ii // W, ii % W], axis=0)                  # (2, HW)

    out = pl.pallas_call(
        _build_kernel(H, W, nb),
        out_shape=jax.ShapeDtypeStruct((N, 64, HW), out_dtype),
        grid=(N // nb,),
        in_specs=[
            pl.BlockSpec((2, HW), lambda g: (0, 0)),               # coords (i32)
            pl.BlockSpec((nb, cin_pad, HW), lambda g: (g, 0, 0)),  # x (bf16)
            pl.BlockSpec(w12.shape, lambda g: (0, 0)),             # w12 (bf16)
            pl.BlockSpec(w34.shape, lambda g: (0, 0)),             # w34 (bf16)
            pl.BlockSpec((64, 1), lambda g: (0, 0)),               # bias (f32)
        ],
        out_specs=pl.BlockSpec((nb, 64, HW), lambda g: (g, 0, 0)),
        compiler_params=pltpu.CompilerParams(
            dimension_semantics=("parallel",)),
    )(coords, x, w12, w34, bias)

    return out.reshape(N, 64, H, W)                                # already NCHW


_msfeat_jit = jax.jit(_msfeat_impl, static_argnames=("nb", "out_dtype"))

# Packed-weight cache keyed on the params object identity (demo-grade cache).
_PACKED_CACHE = {}


def msfeat_forward(x_nchw, params, out_dtype=jnp.float32):
    """PyTorch-compatible entry point: NCHW float32 in -> NCHW (64 ch) out."""
    _resolve_roll_convention()        # static roll sign is needed at trace time
    key = id(params)
    packed = _PACKED_CACHE.get(key)
    if packed is None:
        packed = _pack_params_jit(params)
        _PACKED_CACHE[key] = packed
    N, _, H, W = x_nchw.shape
    nb = _choose_group(N, H * W)
    return _msfeat_jit(x_nchw, packed["w12"], packed["w34"], packed["bias"],
                       nb=nb, out_dtype=out_dtype)


# ---------------------------------------------------------------------------
# Params + reference
# ---------------------------------------------------------------------------
def init_msfeat_params(key, in_channels, dtype=jnp.float32):
    """Kaiming-normal (fan_in, relu) conv weights in HWIO layout, zero biases -
    the same init scheme as the PyTorch module."""
    def kaiming(k, cin, cout):
        fan_in = cin * 3 * 3
        std = (2.0 / fan_in) ** 0.5
        return jax.random.normal(k, (3, 3, cin, cout), dtype) * std

    k1, k2, k3, k4 = jax.random.split(key, 4)
    return {
        "w1": kaiming(k1, in_channels, 16), "b1": jnp.zeros((16,), dtype),
        "w2": kaiming(k2, in_channels, 16), "b2": jnp.zeros((16,), dtype),
        "w3": kaiming(k3, 16, 16),          "b3": jnp.zeros((16,), dtype),
        "w4": kaiming(k4, 16, 16),          "b4": jnp.zeros((16,), dtype),
    }


def _reference_forward(x_nchw, params):
    """Pure-JAX reference (lax conv) mirroring the kernel's precision policy
    (bf16 MXU inputs, f32 accumulation)."""
    def conv(x, w, b, d):
        y = jax.lax.conv_general_dilated(
            x.astype(jnp.bfloat16), w.astype(jnp.bfloat16),
            window_strides=(1, 1), padding=((d, d), (d, d)),
            rhs_dilation=(d, d),
            dimension_numbers=("NCHW", "HWIO", "NCHW"),
            preferred_element_type=jnp.float32)
        return jnp.maximum(y + b.astype(jnp.float32)[None, :, None, None], 0.0)

    c1 = conv(x_nchw, params["w1"], params["b1"], 1)
    c2 = conv(x_nchw, params["w2"], params["b2"], 2)
    c3 = conv(c2, params["w3"], params["b3"], 1)
    c4 = conv(c1, params["w4"], params["b4"], 2)
    return jnp.concatenate((c1, c2, c3, c4), axis=1)


if __name__ == "__main__":
    key = jax.random.PRNGKey(0)
    kx, kp = jax.random.split(key)

    N, Cin, H, W = 2, 4, 16, 16
    x = jax.random.normal(kx, (N, Cin, H, W), jnp.float32)
    params = init_msfeat_params(kp, Cin)

    out = msfeat_forward(x, params)
    out = jax.block_until_ready(out)
    assert out.shape == (N, 64, H, W), out.shape

    ref = _reference_forward(x, params)
    max_err = float(jnp.max(jnp.abs(out - ref)))
    assert jnp.allclose(out, ref, atol=1e-2, rtol=1e-2), max_err

    print("KERNEL_OK")
</pallas_src>

<mosaic_0001>
module attributes {stable_mosaic.version = 11 : i64} {
  func.func @probe(%arg0: memref<8x128xf32, #tpu.memory_space<vmem>>, %arg1: memref<8x128xf32, #tpu.memory_space<vmem>>) attributes {dimension_semantics = [], scalar_prefetch = 0 : i64, scratch_operands = 0 : i64, tpu.core_type = #tpu.core_type<tc>} {
    %c0 = arith.constant 0 : index
    %c0_0 = arith.constant 0 : index
    %0 = vector.load %arg0[%c0, %c0_0] : memref<8x128xf32, #tpu.memory_space<vmem>>, vector<8x128xf32>
    %c1_i32 = arith.constant 1 : i32
    %1 = tpu.dynamic_rotate %0 by %c1_i32 dim 1 : vector<8x128xf32>, i32 -> vector<8x128xf32>
    %c0_1 = arith.constant 0 : index
    %c0_2 = arith.constant 0 : index
    %2 = vector.load %arg1[%c0_1, %c0_2] : memref<8x128xf32, #tpu.memory_space<vmem>>, vector<8x128xf32>
    tpu.vector_store %arg1[%c0_1, %c0_2], %1 {strides = array<i32>} : memref<8x128xf32, #tpu.memory_space<vmem>>, vector<8x128xf32>,
    return
  }
}

</mosaic_0001>

<llo_original>
// kernel: tpu_custom_call.1
$region0: #{tpu_custom_call.1}
  #allocation0 [shape = 'u32[]', space=smem, size = 0x4, offset = 0x4, fixed_abs, tag = 'smem constant byte address 0x4 - core index']
  #allocation1 [shape = 'u32[144,128]{1,0:T(1,128)}', space=vmem, size = 0x12000, scoped, tag = 'internal scratch']
  %s0 = inlined_call_operand.hbm [shape: f32[8,128], index: 0, kind: input, shape index: {}]
  %s1 = inlined_call_operand.hbm [shape: f32[8,128], index: 1, kind: output, shape index: {}]
  %s2 = sld [smem:[#allocation0]]
  $region18: #{tpu_custom_call.1} parent=0
    _
  %s4 = ssub.s32 1, %s2
  %s5 = scalar_select 0, %s4, %s2
  $region1: #{tpu_custom_call.1} parent=0
    #allocation2 [shape = 'u8[4096]{0}', space=vmem, size = 0x1000, scoped, tag = 'input window, operand 0, single buffered']
    #allocation3 [shape = 's32[1]{0}', space=sflag, size = 0x4, scoped, tag = 'scoped memory for tpu_custom_call.1']
    #allocation4 [shape = 's32[1]{0}', space=sflag, size = 0x4, scoped, tag = 'scoped memory for tpu_custom_call.1']
    #allocation5 [shape = 'u8[4096]{0}', space=vmem, size = 0x1000, scoped, tag = 'output window, operand 0, single buffered']
    %6 = vsyncpa [#allocation3], 0
    %7 = vsyncpa [#allocation4], 0
    // Predicated region
    $region2: #{tpu_custom_call.1} parent=1 // pred_check
      _
    $region3: #{tpu_custom_call.1} parent=1 // pred_check_branch
      %9 = sbr.rel (0) target = $region5
    $region4: #{tpu_custom_call.1} parent=1 // pred_region
      %s11 = ssub.s32 128, 128
      %12 = vsyncadd [#allocation3], %s11
      %s14 = sshll.u32 [#allocation2], 4
      %s15 = int_to_ptr.vmem [resolvable:$true] %s14
      %17 = dma.hbm_to_vmem [thread:$0]  %s0, 128, %s15, [#allocation3]
    $region5: #{tpu_custom_call.1} parent=1 // pred_fallthru
      _
    // Predicated region
    $region6: #{tpu_custom_call.1} parent=1 // pred_check
      _
    $region7: #{tpu_custom_call.1} parent=1 // pred_check_branch
      %19 = sbr.rel (0) target = $region9
    $region8: #{tpu_custom_call.1} parent=1 // pred_region
      %20 = dma.done [#allocation3], 128
    $region9: #{tpu_custom_call.1} parent=1 // pred_fallthru
      _
    %v21 = vld [vmem:[#allocation2] sm:$0xff]
    %22 = vrot.lane.b32.xlu0 %v21, 1
    %v23 = vpop.permute.xlu0 %22
    %24 = vst [vmem:[#allocation5] sm:$0xff] %v23
    // Predicated region
    $region10: #{tpu_custom_call.1} parent=1 // pred_check
      _
    $region11: #{tpu_custom_call.1} parent=1 // pred_check_branch
      %26 = sbr.rel (0) target = $region13
    $region12: #{tpu_custom_call.1} parent=1 // pred_region
      %s28 = ssub.s32 128, 128
      %29 = vsyncadd [#allocation4], %s28
      %s31 = sshll.u32 [#allocation5], 4
      %s32 = int_to_ptr.vmem [resolvable:$true] %s31
      %34 = dma.vmem_to_hbm [thread:$0]  %s32, 128, %s1, [#allocation4]
    $region13: #{tpu_custom_call.1} parent=1 // pred_fallthru
      _
    // Predicated region
    $region14: #{tpu_custom_call.1} parent=1 // pred_check
      _
    $region15: #{tpu_custom_call.1} parent=1 // pred_check_branch
      %36 = sbr.rel (0) target = $region17
    $region16: #{tpu_custom_call.1} parent=1 // pred_region
      %37 = dma.done [#allocation4], 128
    $region17: #{tpu_custom_call.1} parent=1 // pred_fallthru
      _
    %38 = vsyncpa [#allocation3], 1
    %39 = vsyncpa [#allocation4], 1

</llo_original>
